<compile_context>
chip_gen: v7x
topology: tpu7x:2x2x1
jax: 0.10.0
libtpu: 0.0.40
codegen_flags: <defaults>
</compile_context>

<pallas_src>
import jax
import jax.numpy as jnp
from jax.experimental import pallas as pl
from jax.experimental.pallas import tpu as pltpu

EPSILON = 1e-12


def _l2_normalize(v):
    # matches torch: v / (v.norm(dim=-1, keepdim=True) + EPSILON)
    n = jnp.sqrt(jnp.sum(v * v, axis=-1, keepdims=True))
    return v * pl.reciprocal(n + EPSILON)   # exact reciprocal; EUP + mul, no vector divide


def relu_model_kernel(
    x_ref,                       # (B, L*V)  one-hot flattened, f32
    w1_ref, b1_ref,              # (L*V, H), (1, H)
    w2_ref, b2_ref,              # (H, H),   (1, H)
    w3_ref, b3_ref,              # (H, H),   (1, H)
    wo_ref, bo_ref,              # (3H, V),  (1, V)
    in1_ref, in2_ref, in3_ref,   # normalized layer inputs (ins[0..2])
    cat_ref,                     # (B, 3H)  concat of hidden activations (ins[3])
    out4_ref,                    # (B, V)   log-probs (outs[3])
):
    H = w1_ref.shape[1]

    x = x_ref[...]

    # ---- hidden layer 1 ----
    inp1 = _l2_normalize(x)
    in1_ref[...] = inp1
    h1 = jnp.maximum(
        jnp.dot(inp1, w1_ref[...], preferred_element_type=jnp.float32) + b1_ref[...],
        0.0)
    cat_ref[:, 0:H] = h1                      # single store, static lane-aligned slice

    # ---- hidden layer 2 ----
    inp2 = _l2_normalize(h1)
    in2_ref[...] = inp2
    h2 = jnp.maximum(
        jnp.dot(inp2, w2_ref[...], preferred_element_type=jnp.float32) + b2_ref[...],
        0.0)
    cat_ref[:, H:2 * H] = h2

    # ---- hidden layer 3 ----
    inp3 = _l2_normalize(h2)
    in3_ref[...] = inp3
    h3 = jnp.maximum(
        jnp.dot(inp3, w3_ref[...], preferred_element_type=jnp.float32) + b3_ref[...],
        0.0)
    cat_ref[:, 2 * H:3 * H] = h3

    # ---- output layer: accumulated dots against static slices of wo, then log_softmax ----
    logits = (
        jnp.dot(h1, wo_ref[0:H, :], preferred_element_type=jnp.float32)
        + jnp.dot(h2, wo_ref[H:2 * H, :], preferred_element_type=jnp.float32)
        + jnp.dot(h3, wo_ref[2 * H:3 * H, :], preferred_element_type=jnp.float32)
        + bo_ref[...]
    )
    m = jnp.max(logits, axis=-1, keepdims=True)
    shifted = logits - m
    lse = jnp.log(jnp.sum(jnp.exp(shifted), axis=-1, keepdims=True))
    out4_ref[...] = shifted - lse


def relu_model_forward(inputs, params, *, vocab_dim):
    """inputs: (B, L) int32 token ids. Returns (ins, outs) like the torch module."""
    w1, b1, w2, b2, w3, b3, wo, bo = params
    B, L = inputs.shape
    D0 = L * vocab_dim
    H = w1.shape[1]
    Hcat = 3 * H

    # glue: one-hot + flatten (indexing setup, not the hot path)
    x = jax.nn.one_hot(inputs, vocab_dim, dtype=jnp.float32).reshape(B, D0)

    vmem = pl.BlockSpec(memory_space=pltpu.MemorySpace.VMEM)
    f32 = jnp.float32
    out_shapes = (
        jax.ShapeDtypeStruct((B, D0), f32),         # ins[0]
        jax.ShapeDtypeStruct((B, H), f32),          # ins[1]
        jax.ShapeDtypeStruct((B, H), f32),          # ins[2]
        jax.ShapeDtypeStruct((B, Hcat), f32),       # ins[3] = concat(h1,h2,h3)
        jax.ShapeDtypeStruct((B, vocab_dim), f32),  # outs[3] log-probs
    )

    in1, in2, in3, cat, logp = pl.pallas_call(
        relu_model_kernel,
        out_shape=out_shapes,
        in_specs=[vmem] * 9,
        out_specs=[vmem] * 5,
    )(x, w1, b1, w2, b2, w3, b3, wo, bo)

    ins = [in1, in2, in3, cat]
    # Hidden activations are stored once inside the kernel (into `cat`);
    # outs[0..2] are cheap XLA slices of that slab.
    outs = [cat[:, 0:H], cat[:, H:2 * H], cat[:, 2 * H:3 * H], logp]
    return ins, outs


def make_params(key, input_len, hidden_layers, hidden_units, vocab_dim):
    """Deterministic synthetic parameters (PyTorch-Linear-like uniform init),
    stored as (in_features, out_features) plus (1, out_features) bias."""
    params = []
    d_in = input_len * vocab_dim
    dims = [(d_in if i == 0 else hidden_units, hidden_units) for i in range(hidden_layers)]
    dims.append((hidden_layers * hidden_units, vocab_dim))
    for (fan_in, fan_out) in dims:
        key, kw, kb = jax.random.split(key, 3)
        bound = 1.0 / jnp.sqrt(fan_in)
        w = jax.random.uniform(kw, (fan_in, fan_out), jnp.float32, -bound, bound)
        b = jax.random.uniform(kb, (1, fan_out), jnp.float32, -bound, bound)
        params += [w, b]
    return tuple(params)


def reference_forward(inputs, params, *, vocab_dim):
    """Pure-JAX reference mirroring the PyTorch forward, for sanity checking."""
    w1, b1, w2, b2, w3, b3, wo, bo = params
    B, L = inputs.shape
    x = jax.nn.one_hot(inputs, vocab_dim, dtype=jnp.float32).reshape(B, L * vocab_dim)
    ins, outs = [], []
    layer_input = x
    for (w, b) in ((w1, b1), (w2, b2), (w3, b3)):
        inp = layer_input / (jnp.linalg.norm(layer_input, axis=-1, keepdims=True) + EPSILON)
        ins.append(inp)
        layer_input = jnp.maximum(inp @ w + b, 0.0)
        outs.append(layer_input)
    cat = jnp.concatenate(outs, axis=-1)
    ins.append(cat)
    probs = jax.nn.log_softmax(cat @ wo + bo, axis=-1)
    outs.append(probs)
    return ins, outs


if __name__ == "__main__":
    # Small shapes consistent with the module: batch=8, input_len=8,
    # hidden_layers=3, hidden_units=256, vocab_dim=32.
    B, L, HL, H, V = 8, 8, 3, 256, 32

    key = jax.random.PRNGKey(0)
    key, k_tok, k_par = jax.random.split(key, 3)
    inputs = jax.random.randint(k_tok, (B, L), 0, V, dtype=jnp.int32)
    params = make_params(k_par, L, HL, H, V)

    ins, outs = relu_model_forward(inputs, params, vocab_dim=V)
    jax.block_until_ready(outs[-1])

    ref_ins, ref_outs = reference_forward(inputs, params, vocab_dim=V)
    for a, b in zip(ins + outs, ref_ins + ref_outs):
        assert a.shape == b.shape
        assert jnp.max(jnp.abs(a - b)) < 1e-4

    print("KERNEL_OK")
</pallas_src>

<mosaic_0001>
module attributes {stable_mosaic.version = 11 : i64} {
  func.func @relu_model_kernel(%arg0: memref<8x256xf32, #tpu.memory_space<vmem>>, %arg1: memref<256x256xf32, #tpu.memory_space<vmem>>, %arg2: memref<1x256xf32, #tpu.memory_space<vmem>>, %arg3: memref<256x256xf32, #tpu.memory_space<vmem>>, %arg4: memref<1x256xf32, #tpu.memory_space<vmem>>, %arg5: memref<256x256xf32, #tpu.memory_space<vmem>>, %arg6: memref<1x256xf32, #tpu.memory_space<vmem>>, %arg7: memref<768x32xf32, #tpu.memory_space<vmem>>, %arg8: memref<1x32xf32, #tpu.memory_space<vmem>>, %arg9: memref<8x256xf32, #tpu.memory_space<vmem>>, %arg10: memref<8x256xf32, #tpu.memory_space<vmem>>, %arg11: memref<8x256xf32, #tpu.memory_space<vmem>>, %arg12: memref<8x768xf32, #tpu.memory_space<vmem>>, %arg13: memref<8x32xf32, #tpu.memory_space<vmem>>) attributes {dimension_semantics = [], scalar_prefetch = 0 : i64, scratch_operands = 0 : i64, tpu.core_type = #tpu.core_type<tc>} {
    %c0 = arith.constant 0 : index
    %c0_0 = arith.constant 0 : index
    %0 = vector.load %arg0[%c0, %c0_0] : memref<8x256xf32, #tpu.memory_space<vmem>>, vector<8x256xf32>
    %1 = arith.mulf %0, %0 : vector<8x256xf32>
    %cst = arith.constant dense<0.000000e+00> : vector<8xf32>
    %2 = vector.multi_reduction <add>, %1, %cst [1] : vector<8x256xf32> to vector<8xf32>
    %3 = vector.shape_cast %2 : vector<8xf32> to vector<8x1xf32>
    %4 = math.sqrt %3 : vector<8x1xf32>
    %cst_1 = arith.constant 9.99999996E-13 : f32
    %5 = vector.broadcast %cst_1 : f32 to vector<8x1xf32>
    %6 = arith.addf %4, %5 : vector<8x1xf32>
    %7 = tpu.reciprocal %6 : vector<8x1xf32> -> vector<8x1xf32>
    %8 = vector.broadcast %7 : vector<8x1xf32> to vector<8x256xf32>
    %9 = arith.mulf %0, %8 : vector<8x256xf32>
    %c0_2 = arith.constant 0 : index
    %c0_3 = arith.constant 0 : index
    %10 = vector.load %arg9[%c0_2, %c0_3] : memref<8x256xf32, #tpu.memory_space<vmem>>, vector<8x256xf32>
    tpu.vector_store %arg9[%c0_2, %c0_3], %9 {strides = array<i32>} : memref<8x256xf32, #tpu.memory_space<vmem>>, vector<8x256xf32>,
    %c0_4 = arith.constant 0 : index
    %c0_5 = arith.constant 0 : index
    %11 = vector.load %arg1[%c0_4, %c0_5] : memref<256x256xf32, #tpu.memory_space<vmem>>, vector<256x256xf32>
    %cst_6 = arith.constant dense<0.000000e+00> : vector<8x256xf32>
    %12 = tpu.matmul %9, %11, %cst_6 {dimension_numbers = #tpu.dot_dimension_numbers<[1], [0], [0], [1], [0, 0, 1, 1], [], []>} : vector<8x256xf32>, vector<256x256xf32>, vector<8x256xf32> -> vector<8x256xf32>
    %c0_7 = arith.constant 0 : index
    %c0_8 = arith.constant 0 : index
    %13 = vector.load %arg2[%c0_7, %c0_8] : memref<1x256xf32, #tpu.memory_space<vmem>>, vector<1x256xf32>
    %14 = vector.broadcast %13 : vector<1x256xf32> to vector<8x256xf32>
    %15 = arith.addf %12, %14 : vector<8x256xf32>
    %cst_9 = arith.constant 0.000000e+00 : f32
    %16 = vector.broadcast %cst_9 : f32 to vector<8x256xf32>
    %17 = arith.maximumf %15, %16 : vector<8x256xf32>
    %c0_10 = arith.constant 0 : index
    %c0_11 = arith.constant 0 : index
    %18 = vector.load %arg12[%c0_10, %c0_11] : memref<8x768xf32, #tpu.memory_space<vmem>>, vector<8x256xf32>
    tpu.vector_store %arg12[%c0_10, %c0_11], %17 {strides = array<i32>} : memref<8x768xf32, #tpu.memory_space<vmem>>, vector<8x256xf32>,
    %19 = arith.mulf %17, %17 : vector<8x256xf32>
    %cst_12 = arith.constant dense<0.000000e+00> : vector<8xf32>
    %20 = vector.multi_reduction <add>, %19, %cst_12 [1] : vector<8x256xf32> to vector<8xf32>
    %21 = vector.shape_cast %20 : vector<8xf32> to vector<8x1xf32>
    %22 = math.sqrt %21 : vector<8x1xf32>
    %cst_13 = arith.constant 9.99999996E-13 : f32
    %23 = vector.broadcast %cst_13 : f32 to vector<8x1xf32>
    %24 = arith.addf %22, %23 : vector<8x1xf32>
    %25 = tpu.reciprocal %24 : vector<8x1xf32> -> vector<8x1xf32>
    %26 = vector.broadcast %25 : vector<8x1xf32> to vector<8x256xf32>
    %27 = arith.mulf %17, %26 : vector<8x256xf32>
    %c0_14 = arith.constant 0 : index
    %c0_15 = arith.constant 0 : index
    %28 = vector.load %arg10[%c0_14, %c0_15] : memref<8x256xf32, #tpu.memory_space<vmem>>, vector<8x256xf32>
    tpu.vector_store %arg10[%c0_14, %c0_15], %27 {strides = array<i32>} : memref<8x256xf32, #tpu.memory_space<vmem>>, vector<8x256xf32>,
    %c0_16 = arith.constant 0 : index
    %c0_17 = arith.constant 0 : index
    %29 = vector.load %arg3[%c0_16, %c0_17] : memref<256x256xf32, #tpu.memory_space<vmem>>, vector<256x256xf32>
    %cst_18 = arith.constant dense<0.000000e+00> : vector<8x256xf32>
    %30 = tpu.matmul %27, %29, %cst_18 {dimension_numbers = #tpu.dot_dimension_numbers<[1], [0], [0], [1], [0, 0, 1, 1], [], []>} : vector<8x256xf32>, vector<256x256xf32>, vector<8x256xf32> -> vector<8x256xf32>
    %c0_19 = arith.constant 0 : index
    %c0_20 = arith.constant 0 : index
    %31 = vector.load %arg4[%c0_19, %c0_20] : memref<1x256xf32, #tpu.memory_space<vmem>>, vector<1x256xf32>
    %32 = vector.broadcast %31 : vector<1x256xf32> to vector<8x256xf32>
    %33 = arith.addf %30, %32 : vector<8x256xf32>
    %cst_21 = arith.constant 0.000000e+00 : f32
    %34 = vector.broadcast %cst_21 : f32 to vector<8x256xf32>
    %35 = arith.maximumf %33, %34 : vector<8x256xf32>
    %c0_22 = arith.constant 0 : index
    %c256 = arith.constant 256 : index
    %36 = vector.load %arg12[%c0_22, %c256] : memref<8x768xf32, #tpu.memory_space<vmem>>, vector<8x256xf32>
    tpu.vector_store %arg12[%c0_22, %c256], %35 {strides = array<i32>} : memref<8x768xf32, #tpu.memory_space<vmem>>, vector<8x256xf32>,
    %37 = arith.mulf %35, %35 : vector<8x256xf32>
    %cst_23 = arith.constant dense<0.000000e+00> : vector<8xf32>
    %38 = vector.multi_reduction <add>, %37, %cst_23 [1] : vector<8x256xf32> to vector<8xf32>
    %39 = vector.shape_cast %38 : vector<8xf32> to vector<8x1xf32>
    %40 = math.sqrt %39 : vector<8x1xf32>
    %cst_24 = arith.constant 9.99999996E-13 : f32
    %41 = vector.broadcast %cst_24 : f32 to vector<8x1xf32>
    %42 = arith.addf %40, %41 : vector<8x1xf32>
    %43 = tpu.reciprocal %42 : vector<8x1xf32> -> vector<8x1xf32>
    %44 = vector.broadcast %43 : vector<8x1xf32> to vector<8x256xf32>
    %45 = arith.mulf %35, %44 : vector<8x256xf32>
    %c0_25 = arith.constant 0 : index
    %c0_26 = arith.constant 0 : index
    %46 = vector.load %arg11[%c0_25, %c0_26] : memref<8x256xf32, #tpu.memory_space<vmem>>, vector<8x256xf32>
    tpu.vector_store %arg11[%c0_25, %c0_26], %45 {strides = array<i32>} : memref<8x256xf32, #tpu.memory_space<vmem>>, vector<8x256xf32>,
    %c0_27 = arith.constant 0 : index
    %c0_28 = arith.constant 0 : index
    %47 = vector.load %arg5[%c0_27, %c0_28] : memref<256x256xf32, #tpu.memory_space<vmem>>, vector<256x256xf32>
    %cst_29 = arith.constant dense<0.000000e+00> : vector<8x256xf32>
    %48 = tpu.matmul %45, %47, %cst_29 {dimension_numbers = #tpu.dot_dimension_numbers<[1], [0], [0], [1], [0, 0, 1, 1], [], []>} : vector<8x256xf32>, vector<256x256xf32>, vector<8x256xf32> -> vector<8x256xf32>
    %c0_30 = arith.constant 0 : index
    %c0_31 = arith.constant 0 : index
    %49 = vector.load %arg6[%c0_30, %c0_31] : memref<1x256xf32, #tpu.memory_space<vmem>>, vector<1x256xf32>
    %50 = vector.broadcast %49 : vector<1x256xf32> to vector<8x256xf32>
    %51 = arith.addf %48, %50 : vector<8x256xf32>
    %cst_32 = arith.constant 0.000000e+00 : f32
    %52 = vector.broadcast %cst_32 : f32 to vector<8x256xf32>
    %53 = arith.maximumf %51, %52 : vector<8x256xf32>
    %c0_33 = arith.constant 0 : index
    %c512 = arith.constant 512 : index
    %54 = vector.load %arg12[%c0_33, %c512] : memref<8x768xf32, #tpu.memory_space<vmem>>, vector<8x256xf32>
    tpu.vector_store %arg12[%c0_33, %c512], %53 {strides = array<i32>} : memref<8x768xf32, #tpu.memory_space<vmem>>, vector<8x256xf32>,
    %c0_34 = arith.constant 0 : index
    %c0_35 = arith.constant 0 : index
    %55 = vector.load %arg7[%c0_34, %c0_35] : memref<768x32xf32, #tpu.memory_space<vmem>>, vector<256x32xf32>
    %cst_36 = arith.constant dense<0.000000e+00> : vector<8x32xf32>
    %56 = tpu.matmul %17, %55, %cst_36 {dimension_numbers = #tpu.dot_dimension_numbers<[1], [0], [0], [1], [0, 0, 1, 1], [], []>} : vector<8x256xf32>, vector<256x32xf32>, vector<8x32xf32> -> vector<8x32xf32>
    %c256_37 = arith.constant 256 : index
    %c0_38 = arith.constant 0 : index
    %57 = vector.load %arg7[%c256_37, %c0_38] : memref<768x32xf32, #tpu.memory_space<vmem>>, vector<256x32xf32>
    %cst_39 = arith.constant dense<0.000000e+00> : vector<8x32xf32>
    %58 = tpu.matmul %35, %57, %cst_39 {dimension_numbers = #tpu.dot_dimension_numbers<[1], [0], [0], [1], [0, 0, 1, 1], [], []>} : vector<8x256xf32>, vector<256x32xf32>, vector<8x32xf32> -> vector<8x32xf32>
    %59 = arith.addf %56, %58 : vector<8x32xf32>
    %c512_40 = arith.constant 512 : index
    %c0_41 = arith.constant 0 : index
    %60 = vector.load %arg7[%c512_40, %c0_41] : memref<768x32xf32, #tpu.memory_space<vmem>>, vector<256x32xf32>
    %cst_42 = arith.constant dense<0.000000e+00> : vector<8x32xf32>
    %61 = tpu.matmul %53, %60, %cst_42 {dimension_numbers = #tpu.dot_dimension_numbers<[1], [0], [0], [1], [0, 0, 1, 1], [], []>} : vector<8x256xf32>, vector<256x32xf32>, vector<8x32xf32> -> vector<8x32xf32>
    %62 = arith.addf %59, %61 : vector<8x32xf32>
    %c0_43 = arith.constant 0 : index
    %c0_44 = arith.constant 0 : index
    %63 = vector.load %arg8[%c0_43, %c0_44] : memref<1x32xf32, #tpu.memory_space<vmem>>, vector<1x32xf32>
    %64 = vector.broadcast %63 : vector<1x32xf32> to vector<8x32xf32>
    %65 = arith.addf %62, %64 : vector<8x32xf32>
    %cst_45 = arith.constant dense<0xFF800000> : vector<8xf32>
    %66 = vector.multi_reduction <maximumf>, %65, %cst_45 [1] : vector<8x32xf32> to vector<8xf32>
    %67 = vector.shape_cast %66 : vector<8xf32> to vector<8x1xf32>
    %68 = vector.broadcast %67 : vector<8x1xf32> to vector<8x32xf32>
    %69 = arith.subf %65, %68 : vector<8x32xf32>
    %70 = math.exp %69 : vector<8x32xf32>
    %cst_46 = arith.constant dense<0.000000e+00> : vector<8xf32>
    %71 = vector.multi_reduction <add>, %70, %cst_46 [1] : vector<8x32xf32> to vector<8xf32>
    %72 = vector.shape_cast %71 : vector<8xf32> to vector<8x1xf32>
    %73 = math.log %72 : vector<8x1xf32>
    %74 = vector.broadcast %73 : vector<8x1xf32> to vector<8x32xf32>
    %75 = arith.subf %69, %74 : vector<8x32xf32>
    %c0_47 = arith.constant 0 : index
    %c0_48 = arith.constant 0 : index
    %76 = vector.load %arg13[%c0_47, %c0_48] : memref<8x32xf32, #tpu.memory_space<vmem>>, vector<8x32xf32>
    tpu.vector_store %arg13[%c0_47, %c0_48], %75 {strides = array<i32>} : memref<8x32xf32, #tpu.memory_space<vmem>>, vector<8x32xf32>,
    return
  }
}

</mosaic_0001>

<llo_original>
// kernel: tpu_custom_call.1
$region0: #{tpu_custom_call.1}
  #allocation0 [shape = 'u32[]', space=smem, size = 0x4, offset = 0x4, fixed_abs, tag = 'smem constant byte address 0x4 - core index']
  #allocation1 [shape = 'u32[144,128]{1,0:T(1,128)}', space=vmem, size = 0x12000, scoped, tag = 'internal scratch']
  %s0 = inlined_call_operand.vmem [shape: f32[8,256], index: 0, kind: input, shape index: {}]
  %s1 = inlined_call_operand.vmem [shape: f32[256,256], index: 1, kind: input, shape index: {}]
  %s2 = inlined_call_operand.vmem [shape: f32[1,256], index: 2, kind: input, shape index: {}]
  %s3 = inlined_call_operand.hbm [shape: f32[256,256], index: 3, kind: input, shape index: {}]
  %s4 = inlined_call_operand.vmem [shape: f32[1,256], index: 4, kind: input, shape index: {}]
  %s5 = inlined_call_operand.hbm [shape: f32[256,256], index: 5, kind: input, shape index: {}]
  %s6 = inlined_call_operand.vmem [shape: f32[1,256], index: 6, kind: input, shape index: {}]
  %s7 = inlined_call_operand.vmem [shape: f32[768,32], index: 7, kind: input, shape index: {}]
  %s8 = inlined_call_operand.vmem [shape: f32[1,32], index: 8, kind: input, shape index: {}]
  %s9 = inlined_call_operand.hbm [shape: f32[8,256], index: 9, kind: output, shape index: {0}]
  %s10 = inlined_call_operand.hbm [shape: f32[8,256], index: 10, kind: output, shape index: {1}]
  %s11 = inlined_call_operand.hbm [shape: f32[8,256], index: 11, kind: output, shape index: {2}]
  %s12 = inlined_call_operand.hbm [shape: f32[8,768], index: 12, kind: output, shape index: {3}]
  %s13 = inlined_call_operand.hbm [shape: f32[8,32], index: 13, kind: output, shape index: {4}]
  %14 = xla_tuple %s9, %s10, %s11, %s12, %s13
  %s15 = sld [smem:[#allocation0]]
  $region86: #{tpu_custom_call.1} parent=0
    _
  %s17 = ssub.s32 1, %s15
  %s18 = scalar_select 0, %s17, %s15
  $region1: #{tpu_custom_call.1} parent=0
    #allocation2 [shape = 'u8[262144]{0}', space=vmem, size = 0x40000, scoped, tag = 'input window, operand 3, single buffered']
    #allocation3 [shape = 's32[1]{0}', space=sflag, size = 0x4, scoped, tag = 'scoped memory for tpu_custom_call.1']
    #allocation4 [shape = 's32[1]{0}', space=sflag, size = 0x4, scoped, tag = 'scoped memory for tpu_custom_call.1']
    #allocation5 [shape = 'u8[262144]{0}', space=vmem, size = 0x40000, scoped, tag = 'input window, operand 5, single buffered']
    #allocation6 [shape = 's32[1]{0}', space=sflag, size = 0x4, scoped, tag = 'scoped memory for tpu_custom_call.1']
    #allocation7 [shape = 'u8[8192]{0}', space=vmem, size = 0x2000, scoped, tag = 'output window, operand 0, single buffered']
    #allocation8 [shape = 'u8[8192]{0}', space=vmem, size = 0x2000, scoped, tag = 'output window, operand 1, single buffered']
    #allocation9 [shape = 's32[1]{0}', space=sflag, size = 0x4, scoped, tag = 'scoped memory for tpu_custom_call.1']
    #allocation10 [shape = 'u8[8192]{0}', space=vmem, size = 0x2000, scoped, tag = 'output window, operand 2, single buffered']
    #allocation11 [shape = 'u8[24576]{0}', space=vmem, size = 0x6000, scoped, tag = 'output window, operand 3, single buffered']
    #allocation12 [shape = 's32[1]{0}', space=sflag, size = 0x4, scoped, tag = 'scoped memory for tpu_custom_call.1']
    #allocation13 [shape = 'u8[4096]{0}', space=vmem, size = 0x1000, scoped, tag = 'output window, operand 4, single buffered']
    %19 = vsyncpa [#allocation3], 0
    %20 = vsyncpa [#allocation6], 0
    %21 = vsyncpa [#allocation4], 0
    %22 = vsyncpa [#allocation9], 0
    %23 = vsyncpa [#allocation12], 0
    // Predicated region
    $region2: #{tpu_custom_call.1} parent=1 // pred_check
      _
    $region3: #{tpu_custom_call.1} parent=1 // pred_check_branch
      %25 = sbr.rel (0) target = $region5
    $region4: #{tpu_custom_call.1} parent=1 // pred_region
      _
    $region5: #{tpu_custom_call.1} parent=1 // pred_fallthru
      _
    // Predicated region
    $region6: #{tpu_custom_call.1} parent=1 // pred_check
      _
    $region7: #{tpu_custom_call.1} parent=1 // pred_check_branch
      %27 = sbr.rel (0) target = $region9
    $region8: #{tpu_custom_call.1} parent=1 // pred_region
      _
    $region9: #{tpu_custom_call.1} parent=1 // pred_fallthru
      _
    // Predicated region
    $region10: #{tpu_custom_call.1} parent=1 // pred_check
      _
    $region11: #{tpu_custom_call.1} parent=1 // pred_check_branch
      %29 = sbr.rel (0) target = $region13
    $region12: #{tpu_custom_call.1} parent=1 // pred_region
      _
    $region13: #{tpu_custom_call.1} parent=1 // pred_fallthru
      _
    // Predicated region
    $region14: #{tpu_custom_call.1} parent=1 // pred_check
      _
    $region15: #{tpu_custom_call.1} parent=1 // pred_check_branch
      %31 = sbr.rel (0) target = $region17
    $region16: #{tpu_custom_call.1} parent=1 // pred_region
      %s33 = ssub.s32 8192, 8192
      %34 = vsyncadd [#allocation3], %s33
      %s35 = sshll.u32 [#allocation2], 4
      %s36 = int_to_ptr.vmem [resolvable:$true] %s35
      %41 = dma.hbm_to_vmem [thread:$0]  %s3, 8192, %s36, [#allocation3], 256, 256, 16
    $region17: #{tpu_custom_call.1} parent=1 // pred_fallthru
      _
    // Predicated region
    $region18: #{tpu_custom_call.1} parent=1 // pred_check
      _
    $region19: #{tpu_custom_call.1} parent=1 // pred_check_branch
      %43 = sbr.rel (0) target = $region21
    $region20: #{tpu_custom_call.1} parent=1 // pred_region
      _
    $region21: #{tpu_custom_call.1} parent=1 // pred_fallthru
      _
    // Predicated region
    $region22: #{tpu_custom_call.1} parent=1 // pred_check
      _
    $region23: #{tpu_custom_call.1} parent=1 // pred_check_branch
      %45 = sbr.rel (0) target = $region25
    $region24: #{tpu_custom_call.1} parent=1 // pred_region
      %s47 = ssub.s32 8192, 8192
      %48 = vsyncadd [#allocation6], %s47
      %s49 = sshll.u32 [#allocation5], 4
      %s50 = int_to_ptr.vmem [resolvable:$true] %s49
      %55 = dma.hbm_to_vmem [thread:$0]  %s5, 8192, %s50, [#allocation6], 256, 256, 16
    $region25: #{tpu_custom_call.1} parent=1 // pred_fallthru
      _
    // Predicated region
    $region26: #{tpu_custom_call.1} parent=1 // pred_check
      _
    $region27: #{tpu_custom_call.1} parent=1 // pred_check_branch
      %57 = sbr.rel (0) target = $region29
    $region28: #{tpu_custom_call.1} parent=1 // pred_region
      _
    $region29: #{tpu_custom_call.1} parent=1 // pred_fallthru
      _
    // Predicated region
    $region30: #{tpu_custom_call.1} parent=1 // pred_check
      _
    $region31: #{tpu_custom_call.1} parent=1 // pred_check_branch
      %59 = sbr.rel (0) target = $region33
    $region32: #{tpu_custom_call.1} parent=1 // pred_region
      _
    $region33: #{tpu_custom_call.1} parent=1 // pred_fallthru
      _
    // Predicated region
    $region34: #{tpu_custom_call.1} parent=1 // pred_check
      _
    $region35: #{tpu_custom_call.1} parent=1 // pred_check_branch
      %61 = sbr.rel (0) target = $region37
    $region36: #{tpu_custom_call.1} parent=1 // pred_region
      _
    $region37: #{tpu_custom_call.1} parent=1 // pred_fallthru
      _
    // Predicated region
    $region38: #{tpu_custom_call.1} parent=1 // pred_check
      _
    $region39: #{tpu_custom_call.1} parent=1 // pred_check_branch
      %63 = sbr.rel (0) target = $region41
    $region40: #{tpu_custom_call.1} parent=1 // pred_region
      %64 = dma.done [#allocation3], 8192
    $region41: #{tpu_custom_call.1} parent=1 // pred_fallthru
      _
    // Predicated region
    $region42: #{tpu_custom_call.1} parent=1 // pred_check
      _
    $region43: #{tpu_custom_call.1} parent=1 // pred_check_branch
      %66 = sbr.rel (0) target = $region45
    $region44: #{tpu_custom_call.1} parent=1 // pred_region
      %67 = dma.done [#allocation6], 8192
    $region45: #{tpu_custom_call.1} parent=1 // pred_fallthru
      _
    %v68 = vld [vmem:[%s0] sm:$0xff]
    %v69 = vld [vmem:[%s0 + $0x8] sm:$0xff]
    %v70 = vmul.f32 %v68, %v68
    %v71 = vmul.f32 %v69, %v69
    %v72 = vadd.f32 %v70, %v71
    %73 = vadd.xlane.f32.xlu0 %v72
    %v74 = vpop.xlane.xlu0 %73
    %v75 = vrsqrt.pop %v74
    %v76 = vmul.f32 %v74, %v75
    %vm77 = vcmp.eq.f32.partialorder %v74, inf
    %v78 = vsel %vm77, %v74, %v76
    %vm79 = vcmp.eq.f32.partialorder %v74, 0.0
    %v80 = vand.u32 %v74, 2147483648
    %v81 = vsel %vm79, %v80, %v78
    %v82 = vadd.f32 %v81, 1e-12
    %v83 = vrcp.pop %v82
    %v84 = vmul.f32 %v68, %v83
    %v85 = vmul.f32 %v69, %v83
    %86 = vst [vmem:[#allocation7] sm:$0xff] %v84
    %87 = vst [vmem:[#allocation7 + $0x8] sm:$0xff] %v85
    %v88 = vld [vmem:[%s1] sm:$0xff]
    %v89 = vld [vmem:[%s1 + $0x8] sm:$0xff]
    %v90 = vld [vmem:[%s1 + $0x10] sm:$0xff]
    %v91 = vld [vmem:[%s1 + $0x18] sm:$0xff]
    %v92 = vld [vmem:[%s1 + $0x20] sm:$0xff]
    %v93 = vld [vmem:[%s1 + $0x28] sm:$0xff]
    %v94 = vld [vmem:[%s1 + $0x30] sm:$0xff]
    %v95 = vld [vmem:[%s1 + $0x38] sm:$0xff]
    %v96 = vld [vmem:[%s1 + $0x40] sm:$0xff]
    %v97 = vld [vmem:[%s1 + $0x48] sm:$0xff]
    %v98 = vld [vmem:[%s1 + $0x50] sm:$0xff]
    %v99 = vld [vmem:[%s1 + $0x58] sm:$0xff]
    %v100 = vld [vmem:[%s1 + $0x60] sm:$0xff]
    %v101 = vld [vmem:[%s1 + $0x68] sm:$0xff]
    %v102 = vld [vmem:[%s1 + $0x70] sm:$0xff]
    %v103 = vld [vmem:[%s1 + $0x78] sm:$0xff]
    %v104 = vld [vmem:[%s1 + $0x80] sm:$0xff]
    %v105 = vld [vmem:[%s1 + $0x88] sm:$0xff]
    %v106 = vld [vmem:[%s1 + $0x90] sm:$0xff]
    %v107 = vld [vmem:[%s1 + $0x98] sm:$0xff]
    %v108 = vld [vmem:[%s1 + $0xa0] sm:$0xff]
    %v109 = vld [vmem:[%s1 + $0xa8] sm:$0xff]
    %v110 = vld [vmem:[%s1 + $0xb0] sm:$0xff]
    %v111 = vld [vmem:[%s1 + $0xb8] sm:$0xff]
    %v112 = vld [vmem:[%s1 + $0xc0] sm:$0xff]
    %v113 = vld [vmem:[%s1 + $0xc8] sm:$0xff]
    %v114 = vld [vmem:[%s1 + $0xd0] sm:$0xff]
    %v115 = vld [vmem:[%s1 + $0xd8] sm:$0xff]
    %v116 = vld [vmem:[%s1 + $0xe0] sm:$0xff]
    %v117 = vld [vmem:[%s1 + $0xe8] sm:$0xff]
    %v118 = vld [vmem:[%s1 + $0xf0] sm:$0xff]
    %v119 = vld [vmem:[%s1 + $0xf8] sm:$0xff]
    %v120 = vld [vmem:[%s1 + $0x100] sm:$0xff]
    %v121 = vld [vmem:[%s1 + $0x108] sm:$0xff]
    %v122 = vld [vmem:[%s1 + $0x110] sm:$0xff]
    %v123 = vld [vmem:[%s1 + $0x118] sm:$0xff]
    %v124 = vld [vmem:[%s1 + $0x120] sm:$0xff]
    %v125 = vld [vmem:[%s1 + $0x128] sm:$0xff]
    %v126 = vld [vmem:[%s1 + $0x130] sm:$0xff]
    %v127 = vld [vmem:[%s1 + $0x138] sm:$0xff]
    %v128 = vld [vmem:[%s1 + $0x140] sm:$0xff]
    %v129 = vld [vmem:[%s1 + $0x148] sm:$0xff]
    %v130 = vld [vmem:[%s1 + $0x150] sm:$0xff]
    %v131 = vld [vmem:[%s1 + $0x158] sm:$0xff]
    %v132 = vld [vmem:[%s1 + $0x160] sm:$0xff]
    %v133 = vld [vmem:[%s1 + $0x168] sm:$0xff]
    %v134 = vld [vmem:[%s1 + $0x170] sm:$0xff]
    %v135 = vld [vmem:[%s1 + $0x178] sm:$0xff]
    %v136 = vld [vmem:[%s1 + $0x180] sm:$0xff]
    %v137 = vld [vmem:[%s1 + $0x188] sm:$0xff]
    %v138 = vld [vmem:[%s1 + $0x190] sm:$0xff]
    %v139 = vld [vmem:[%s1 + $0x198] sm:$0xff]
    %v140 = vld [vmem:[%s1 + $0x1a0] sm:$0xff]
    %v141 = vld [vmem:[%s1 + $0x1a8] sm:$0xff]
    %v142 = vld [vmem:[%s1 + $0x1b0] sm:$0xff]
    %v143 = vld [vmem:[%s1 + $0x1b8] sm:$0xff]
    %v144 = vld [vmem:[%s1 + $0x1c0] sm:$0xff]
    %v145 = vld [vmem:[%s1 + $0x1c8] sm:$0xff]
    %v146 = vld [vmem:[%s1 + $0x1d0] sm:$0xff]
    %v147 = vld [vmem:[%s1 + $0x1d8] sm:$0xff]
    %v148 = vld [vmem:[%s1 + $0x1e0] sm:$0xff]
    %v149 = vld [vmem:[%s1 + $0x1e8] sm:$0xff]
    %v150 = vld [vmem:[%s1 + $0x1f0] sm:$0xff]
    %v151 = vld [vmem:[%s1 + $0x1f8] sm:$0xff]
    %v152 = vld [vmem:[%s2] sm:$0x3]
    %v154 = vlaneseq
    %v155 = vshrl.u32 %v154, 7
    %v156 = vsub.s32 0, %v155
    %v157 = vrot.slane %v152, %v156
    %v158 = vlaneseq
    %v159 = vshrl.u32 %v158, 7
    %v160 = vsub.s32 1, %v159
    %v161 = vrot.slane %v152, %v160
    %164 = vmatprep.subr.mxu0 %v89
    %165 = vmatpush1.msra.mxu0 %v88
    %166 = vmatprep.subr.mxu0 %v91
    %167 = vmatpush1.msra.mxu0 %v90
    %168 = vmatprep.subr.mxu0 %v93
    %169 = vmatpush1.msra.mxu0 %v92
    %170 = vmatprep.subr.mxu0 %v95
    %171 = vmatpush1.msra.mxu0 %v94
    %172 = vmatprep.subr.mxu0 %v97
    %173 = vmatpush1.msra.mxu0 %v96
    %174 = vmatprep.subr.mxu0 %v99
    %175 = vmatpush1.msra.mxu0 %v98
    %176 = vmatprep.subr.mxu0 %v101
    %177 = vmatpush1.msra.mxu0 %v100
    %178 = vmatprep.subr.mxu0 %v103
    %179 = vmatpush1.msra.mxu0 %v102
    %180 = vmatprep.subr.mxu0 %v105
    %181 = vmatpush1.msra.mxu0 %v104
    %182 = vmatprep.subr.mxu0 %v107
    %183 = vmatpush1.msra.mxu0 %v106
    %184 = vmatprep.subr.mxu0 %v109
    %185 = vmatpush1.msra.mxu0 %v108
    %186 = vmatprep.subr.mxu0 %v111
    %187 = vmatpush1.msra.mxu0 %v110
    %188 = vmatprep.subr.mxu0 %v113
    %189 = vmatpush1.msra.mxu0 %v112
    %190 = vmatprep.subr.mxu0 %v115
    %191 = vmatpush1.msra.mxu0 %v114
    %192 = vmatprep.subr.mxu0 %v117
    %193 = vmatpush1.msra.mxu0 %v116
    %194 = vmatprep.subr.mxu0 %v119
    %195 = vmatpush1.msra.mxu0 %v118
    %196 = vmatprep.subr.mxu0 %v121
    %197 = vmatpush1.msra.mxu0 %v120
    %198 = vmatprep.subr.mxu0 %v123
    %199 = vmatpush1.msra.mxu0 %v122
    %200 = vmatprep.subr.mxu0 %v125
    %201 = vmatpush1.msra.mxu0 %v124
    %202 = vmatprep.subr.mxu0 %v127
    %203 = vmatpush1.msra.mxu0 %v126
    %204 = vmatprep.subr.mxu0 %v129
    %205 = vmatpush1.msra.mxu0 %v128
    %206 = vmatprep.subr.mxu0 %v131
    %207 = vmatpush1.msra.mxu0 %v130
    %208 = vmatprep.subr.mxu0 %v133
    %209 = vmatpush1.msra.mxu0 %v132
    %210 = vmatprep.subr.mxu0 %v135
    %211 = vmatpush1.msra.mxu0 %v134
    %212 = vmatprep.subr.mxu0 %v137
    %213 = vmatpush1.msra.mxu0 %v136
    %214 = vmatprep.subr.mxu0 %v139
    %215 = vmatpush1.msra.mxu0 %v138
    %216 = vmatprep.subr.mxu0 %v141
    %217 = vmatpush1.msra.mxu0 %v140
    %218 = vmatprep.subr.mxu0 %v143
    %219 = vmatpush1.msra.mxu0 %v142
    %220 = vmatprep.subr.mxu0 %v145
    %221 = vmatpush1.msra.mxu0 %v144
    %222 = vmatprep.subr.mxu0 %v147
    %223 = vmatpush1.msra.mxu0 %v146
    %224 = vmatprep.subr.mxu0 %v149
    %225 = vmatpush1.msra.mxu0 %v148
    %226 = vmatprep.subr.mxu0 %v151
    %227 = vmatpush1.msra.mxu0 %v150
    %228 = vmatprep.mubr.f32.mxu0 %v85
    %229 = vmatmul.mubr.f32.gmra.mrb[0].mxu0 %v84
    %v230 = vpop.f32.mrb[0].mxu0
    %v231 = vadd.f32 %v157, %v230
    %v232 = vpop.f32.mrb[0].mxu0
    %v233 = vadd.f32 %v161, %v232
    %234 = vdwg.mxu0
    %v235 = vmax.f32 %v231, 0.0
    %v236 = vmax.f32 %v233, 0.0
    %237 = vst [vmem:[#allocation11] sm:$0xff] %v235
    %238 = vst [vmem:[#allocation11 + $0x8] sm:$0xff] %v236
    %v239 = vmul.f32 %v235, %v235
    %v240 = vmul.f32 %v236, %v236
    %v241 = vadd.f32 %v239, %v240
    %242 = vadd.xlane.f32.xlu0 %v241
    %v243 = vpop.xlane.xlu0 %242
    %v244 = vrsqrt.pop %v243
    %v245 = vmul.f32 %v243, %v244
    %vm246 = vcmp.eq.f32.partialorder %v243, inf
    %v247 = vsel %vm246, %v243, %v245
    %vm248 = vcmp.eq.f32.partialorder %v243, 0.0
    %v249 = vand.u32 %v243, 2147483648
    %v250 = vsel %vm248, %v249, %v247
    %v251 = vadd.f32 %v250, 1e-12
    %v252 = vrcp.pop %v251
    %v253 = vmul.f32 %v235, %v252
    %v254 = vmul.f32 %v236, %v252
    %255 = vst [vmem:[#allocation8] sm:$0xff] %v253
    %256 = vst [vmem:[#allocation8 + $0x8] sm:$0xff] %v254
    %v257 = vld [vmem:[#allocation2] sm:$0xff]
    %v258 = vld [vmem:[#allocation2 + $0x8] sm:$0xff]
    %v259 = vld [vmem:[#allocation2 + $0x10] sm:$0xff]
    %v260 = vld [vmem:[#allocation2 + $0x18] sm:$0xff]
    %v261 = vld [vmem:[#allocation2 + $0x20] sm:$0xff]
    %v262 = vld [vmem:[#allocation2 + $0x28] sm:$0xff]
    %v263 = vld [vmem:[#allocation2 + $0x30] sm:$0xff]
    %v264 = vld [vmem:[#allocation2 + $0x38] sm:$0xff]
    %v265 = vld [vmem:[#allocation2 + $0x40] sm:$0xff]
    %v266 = vld [vmem:[#allocation2 + $0x48] sm:$0xff]
    %v267 = vld [vmem:[#allocation2 + $0x50] sm:$0xff]
    %v268 = vld [vmem:[#allocation2 + $0x58] sm:$0xff]
    %v269 = vld [vmem:[#allocation2 + $0x60] sm:$0xff]
    %v270 = vld [vmem:[#allocation2 + $0x68] sm:$0xff]
    %v271 = vld [vmem:[#allocation2 + $0x70] sm:$0xff]
    %v272 = vld [vmem:[#allocation2 + $0x78] sm:$0xff]
    %v273 = vld [vmem:[#allocation2 + $0x80] sm:$0xff]
    %v274 = vld [vmem:[#allocation2 + $0x88] sm:$0xff]
    %v275 = vld [vmem:[#allocation2 + $0x90] sm:$0xff]
    %v276 = vld [vmem:[#allocation2 + $0x98] sm:$0xff]
    %v277 = vld [vmem:[#allocation2 + $0xa0] sm:$0xff]
    %v278 = vld [vmem:[#allocation2 + $0xa8] sm:$0xff]
    %v279 = vld [vmem:[#allocation2 + $0xb0] sm:$0xff]
    %v280 = vld [vmem:[#allocation2 + $0xb8] sm:$0xff]
    %v281 = vld [vmem:[#allocation2 + $0xc0] sm:$0xff]
    %v282 = vld [vmem:[#allocation2 + $0xc8] sm:$0xff]
    %v283 = vld [vmem:[#allocation2 + $0xd0] sm:$0xff]
    %v284 = vld [vmem:[#allocation2 + $0xd8] sm:$0xff]
    %v285 = vld [vmem:[#allocation2 + $0xe0] sm:$0xff]
    %v286 = vld [vmem:[#allocation2 + $0xe8] sm:$0xff]
    %v287 = vld [vmem:[#allocation2 + $0xf0] sm:$0xff]
    %v288 = vld [vmem:[#allocation2 + $0xf8] sm:$0xff]
    %v289 = vld [vmem:[#allocation2 + $0x100] sm:$0xff]
    %v290 = vld [vmem:[#allocation2 + $0x108] sm:$0xff]
    %v291 = vld [vmem:[#allocation2 + $0x110] sm:$0xff]
    %v292 = vld [vmem:[#allocation2 + $0x118] sm:$0xff]
    %v293 = vld [vmem:[#allocation2 + $0x120] sm:$0xff]
    %v294 = vld [vmem:[#allocation2 + $0x128] sm:$0xff]
    %v295 = vld [vmem:[#allocation2 + $0x130] sm:$0xff]
    %v296 = vld [vmem:[#allocation2 + $0x138] sm:$0xff]
    %v297 = vld [vmem:[#allocation2 + $0x140] sm:$0xff]
    %v298 = vld [vmem:[#allocation2 + $0x148] sm:$0xff]
    %v299 = vld [vmem:[#allocation2 + $0x150] sm:$0xff]
    %v300 = vld [vmem:[#allocation2 + $0x158] sm:$0xff]
    %v301 = vld [vmem:[#allocation2 + $0x160] sm:$0xff]
    %v302 = vld [vmem:[#allocation2 + $0x168] sm:$0xff]
    %v303 = vld [vmem:[#allocation2 + $0x170] sm:$0xff]
    %v304 = vld [vmem:[#allocation2 + $0x178] sm:$0xff]
    %v305 = vld [vmem:[#allocation2 + $0x180] sm:$0xff]
    %v306 = vld [vmem:[#allocation2 + $0x188] sm:$0xff]
    %v307 = vld [vmem:[#allocation2 + $0x190] sm:$0xff]
    %v308 = vld [vmem:[#allocation2 + $0x198] sm:$0xff]
    %v309 = vld [vmem:[#allocation2 + $0x1a0] sm:$0xff]
    %v310 = vld [vmem:[#allocation2 + $0x1a8] sm:$0xff]
    %v311 = vld [vmem:[#allocation2 + $0x1b0] sm:$0xff]
    %v312 = vld [vmem:[#allocation2 + $0x1b8] sm:$0xff]
    %v313 = vld [vmem:[#allocation2 + $0x1c0] sm:$0xff]
    %v314 = vld [vmem:[#allocation2 + $0x1c8] sm:$0xff]
    %v315 = vld [vmem:[#allocation2 + $0x1d0] sm:$0xff]
    %v316 = vld [vmem:[#allocation2 + $0x1d8] sm:$0xff]
    %v317 = vld [vmem:[#allocation2 + $0x1e0] sm:$0xff]
    %v318 = vld [vmem:[#allocation2 + $0x1e8] sm:$0xff]
    %v319 = vld [vmem:[#allocation2 + $0x1f0] sm:$0xff]
    %v320 = vld [vmem:[#allocation2 + $0x1f8] sm:$0xff]
    %v321 = vld [vmem:[%s4] sm:$0x3]
    %v323 = vlaneseq
    %v324 = vshrl.u32 %v323, 7
    %v325 = vsub.s32 0, %v324
    %v326 = vrot.slane %v321, %v325
    %v327 = vlaneseq
    %v328 = vshrl.u32 %v327, 7
    %v329 = vsub.s32 1, %v328
    %v330 = vrot.slane %v321, %v329
    %333 = vmatprep.subr.mxu0 %v258
    %334 = vmatpush1.msra.mxu0 %v257
    %335 = vmatprep.subr.mxu0 %v260
    %336 = vmatpush1.msra.mxu0 %v259
    %337 = vmatprep.subr.mxu0 %v262
    %338 = vmatpush1.msra.mxu0 %v261
    %339 = vmatprep.subr.mxu0 %v264
    %340 = vmatpush1.msra.mxu0 %v263
    %341 = vmatprep.subr.mxu0 %v266
    %342 = vmatpush1.msra.mxu0 %v265
    %343 = vmatprep.subr.mxu0 %v268
    %344 = vmatpush1.msra.mxu0 %v267
    %345 = vmatprep.subr.mxu0 %v270
    %346 = vmatpush1.msra.mxu0 %v269
    %347 = vmatprep.subr.mxu0 %v272
    %348 = vmatpush1.msra.mxu0 %v271
    %349 = vmatprep.subr.mxu0 %v274
    %350 = vmatpush1.msra.mxu0 %v273
    %351 = vmatprep.subr.mxu0 %v276
    %352 = vmatpush1.msra.mxu0 %v275
    %353 = vmatprep.subr.mxu0 %v278
    %354 = vmatpush1.msra.mxu0 %v277
    %355 = vmatprep.subr.mxu0 %v280
    %356 = vmatpush1.msra.mxu0 %v279
    %357 = vmatprep.subr.mxu0 %v282
    %358 = vmatpush1.msra.mxu0 %v281
    %359 = vmatprep.subr.mxu0 %v284
    %360 = vmatpush1.msra.mxu0 %v283
    %361 = vmatprep.subr.mxu0 %v286
    %362 = vmatpush1.msra.mxu0 %v285
    %363 = vmatprep.subr.mxu0 %v288
    %364 = vmatpush1.msra.mxu0 %v287
    %365 = vmatprep.subr.mxu0 %v290
    %366 = vmatpush1.msra.mxu0 %v289
    %367 = vmatprep.subr.mxu0 %v292
    %368 = vmatpush1.msra.mxu0 %v291
    %369 = vmatprep.subr.mxu0 %v294
    %370 = vmatpush1.msra.mxu0 %v293
    %371 = vmatprep.subr.mxu0 %v296
    %372 = vmatpush1.msra.mxu0 %v295
    %373 = vmatprep.subr.mxu0 %v298
    %374 = vmatpush1.msra.mxu0 %v297
    %375 = vmatprep.subr.mxu0 %v300
    %376 = vmatpush1.msra.mxu0 %v299
    %377 = vmatprep.subr.mxu0 %v302
    %378 = vmatpush1.msra.mxu0 %v301
    %379 = vmatprep.subr.mxu0 %v304
    %380 = vmatpush1.msra.mxu0 %v303
    %381 = vmatprep.subr.mxu0 %v306
    %382 = vmatpush1.msra.mxu0 %v305
    %383 = vmatprep.subr.mxu0 %v308
    %384 = vmatpush1.msra.mxu0 %v307
    %385 = vmatprep.subr.mxu0 %v310
    %386 = vmatpush1.msra.mxu0 %v309
    %387 = vmatprep.subr.mxu0 %v312
    %388 = vmatpush1.msra.mxu0 %v311
    %389 = vmatprep.subr.mxu0 %v314
    %390 = vmatpush1.msra.mxu0 %v313
    %391 = vmatprep.subr.mxu0 %v316
    %392 = vmatpush1.msra.mxu0 %v315
    %393 = vmatprep.subr.mxu0 %v318
    %394 = vmatpush1.msra.mxu0 %v317
    %395 = vmatprep.subr.mxu0 %v320
    %396 = vmatpush1.msra.mxu0 %v319
    %397 = vmatprep.mubr.f32.mxu0 %v254
    %398 = vmatmul.mubr.f32.gmra.mrb[0].mxu0 %v253
    %v399 = vpop.f32.mrb[0].mxu0
    %v400 = vadd.f32 %v326, %v399
    %v401 = vpop.f32.mrb[0].mxu0
    %v402 = vadd.f32 %v330, %v401
    %403 = vdwg.mxu0
    %v404 = vmax.f32 %v400, 0.0
    %v405 = vmax.f32 %v402, 0.0
    %406 = vst [vmem:[#allocation11 + $0x10] sm:$0xff] %v404
    %407 = vst [vmem:[#allocation11 + $0x18] sm:$0xff] %v405
    %v408 = vmul.f32 %v404, %v404
    %v409 = vmul.f32 %v405, %v405
    %v410 = vadd.f32 %v408, %v409
    %411 = vadd.xlane.f32.xlu0 %v410
    %v412 = vpop.xlane.xlu0 %411
    %v413 = vrsqrt.pop %v412
    %v414 = vmul.f32 %v412, %v413
    %vm415 = vcmp.eq.f32.partialorder %v412, inf
    %v416 = vsel %vm415, %v412, %v414
    %vm417 = vcmp.eq.f32.partialorder %v412, 0.0
    %v418 = vand.u32 %v412, 2147483648
    %v419 = vsel %vm417, %v418, %v416
    %v420 = vadd.f32 %v419, 1e-12
    %v421 = vrcp.pop %v420
    %v422 = vmul.f32 %v404, %v421
    %v423 = vmul.f32 %v405, %v421
    %424 = vst [vmem:[#allocation10] sm:$0xff] %v422
    %425 = vst [vmem:[#allocation10 + $0x8] sm:$0xff] %v423
    %v426 = vld [vmem:[#allocation5] sm:$0xff]
    %v427 = vld [vmem:[#allocation5 + $0x8] sm:$0xff]
    %v428 = vld [vmem:[#allocation5 + $0x10] sm:$0xff]
    %v429 = vld [vmem:[#allocation5 + $0x18] sm:$0xff]
    %v430 = vld [vmem:[#allocation5 + $0x20] sm:$0xff]
    %v431 = vld [vmem:[#allocation5 + $0x28] sm:$0xff]
    %v432 = vld [vmem:[#allocation5 + $0x30] sm:$0xff]
    %v433 = vld [vmem:[#allocation5 + $0x38] sm:$0xff]
    %v434 = vld [vmem:[#allocation5 + $0x40] sm:$0xff]
    %v435 = vld [vmem:[#allocation5 + $0x48] sm:$0xff]
    %v436 = vld [vmem:[#allocation5 + $0x50] sm:$0xff]
    %v437 = vld [vmem:[#allocation5 + $0x58] sm:$0xff]
    %v438 = vld [vmem:[#allocation5 + $0x60] sm:$0xff]
    %v439 = vld [vmem:[#allocation5 + $0x68] sm:$0xff]
    %v440 = vld [vmem:[#allocation5 + $0x70] sm:$0xff]
    %v441 = vld [vmem:[#allocation5 + $0x78] sm:$0xff]
    %v442 = vld [vmem:[#allocation5 + $0x80] sm:$0xff]
    %v443 = vld [vmem:[#allocation5 + $0x88] sm:$0xff]
    %v444 = vld [vmem:[#allocation5 + $0x90] sm:$0xff]
    %v445 = vld [vmem:[#allocation5 + $0x98] sm:$0xff]
    %v446 = vld [vmem:[#allocation5 + $0xa0] sm:$0xff]
    %v447 = vld [vmem:[#allocation5 + $0xa8] sm:$0xff]
    %v448 = vld [vmem:[#allocation5 + $0xb0] sm:$0xff]
    %v449 = vld [vmem:[#allocation5 + $0xb8] sm:$0xff]
    %v450 = vld [vmem:[#allocation5 + $0xc0] sm:$0xff]
    %v451 = vld [vmem:[#allocation5 + $0xc8] sm:$0xff]
    %v452 = vld [vmem:[#allocation5 + $0xd0] sm:$0xff]
    %v453 = vld [vmem:[#allocation5 + $0xd8] sm:$0xff]
    %v454 = vld [vmem:[#allocation5 + $0xe0] sm:$0xff]
    %v455 = vld [vmem:[#allocation5 + $0xe8] sm:$0xff]
    %v456 = vld [vmem:[#allocation5 + $0xf0] sm:$0xff]
    %v457 = vld [vmem:[#allocation5 + $0xf8] sm:$0xff]
    %v458 = vld [vmem:[#allocation5 + $0x100] sm:$0xff]
    %v459 = vld [vmem:[#allocation5 + $0x108] sm:$0xff]
    %v460 = vld [vmem:[#allocation5 + $0x110] sm:$0xff]
    %v461 = vld [vmem:[#allocation5 + $0x118] sm:$0xff]
    %v462 = vld [vmem:[#allocation5 + $0x120] sm:$0xff]
    %v463 = vld [vmem:[#allocation5 + $0x128] sm:$0xff]
    %v464 = vld [vmem:[#allocation5 + $0x130] sm:$0xff]
    %v465 = vld [vmem:[#allocation5 + $0x138] sm:$0xff]
    %v466 = vld [vmem:[#allocation5 + $0x140] sm:$0xff]
    %v467 = vld [vmem:[#allocation5 + $0x148] sm:$0xff]
    %v468 = vld [vmem:[#allocation5 + $0x150] sm:$0xff]
    %v469 = vld [vmem:[#allocation5 + $0x158] sm:$0xff]
    %v470 = vld [vmem:[#allocation5 + $0x160] sm:$0xff]
    %v471 = vld [vmem:[#allocation5 + $0x168] sm:$0xff]
    %v472 = vld [vmem:[#allocation5 + $0x170] sm:$0xff]
    %v473 = vld [vmem:[#allocation5 + $0x178] sm:$0xff]
    %v474 = vld [vmem:[#allocation5 + $0x180] sm:$0xff]
    %v475 = vld [vmem:[#allocation5 + $0x188] sm:$0xff]
    %v476 = vld [vmem:[#allocation5 + $0x190] sm:$0xff]
    %v477 = vld [vmem:[#allocation5 + $0x198] sm:$0xff]
    %v478 = vld [vmem:[#allocation5 + $0x1a0] sm:$0xff]
    %v479 = vld [vmem:[#allocation5 + $0x1a8] sm:$0xff]
    %v480 = vld [vmem:[#allocation5 + $0x1b0] sm:$0xff]
    %v481 = vld [vmem:[#allocation5 + $0x1b8] sm:$0xff]
    %v482 = vld [vmem:[#allocation5 + $0x1c0] sm:$0xff]
    %v483 = vld [vmem:[#allocation5 + $0x1c8] sm:$0xff]
    %v484 = vld [vmem:[#allocation5 + $0x1d0] sm:$0xff]
    %v485 = vld [vmem:[#allocation5 + $0x1d8] sm:$0xff]
    %v486 = vld [vmem:[#allocation5 + $0x1e0] sm:$0xff]
    %v487 = vld [vmem:[#allocation5 + $0x1e8] sm:$0xff]
    %v488 = vld [vmem:[#allocation5 + $0x1f0] sm:$0xff]
    %v489 = vld [vmem:[#allocation5 + $0x1f8] sm:$0xff]
    %v490 = vld [vmem:[%s6] sm:$0x3]
    %v492 = vlaneseq
    %v493 = vshrl.u32 %v492, 7
    %v494 = vsub.s32 0, %v493
    %v495 = vrot.slane %v490, %v494
    %v496 = vlaneseq
    %v497 = vshrl.u32 %v496, 7
    %v498 = vsub.s32 1, %v497
    %v499 = vrot.slane %v490, %v498
    %502 = vmatprep.subr.mxu0 %v427
    %503 = vmatpush1.msra.mxu0 %v426
    %504 = vmatprep.subr.mxu0 %v429
    %505 = vmatpush1.msra.mxu0 %v428
    %506 = vmatprep.subr.mxu0 %v431
    %507 = vmatpush1.msra.mxu0 %v430
    %508 = vmatprep.subr.mxu0 %v433
    %509 = vmatpush1.msra.mxu0 %v432
    %510 = vmatprep.subr.mxu0 %v435
    %511 = vmatpush1.msra.mxu0 %v434
    %512 = vmatprep.subr.mxu0 %v437
    %513 = vmatpush1.msra.mxu0 %v436
    %514 = vmatprep.subr.mxu0 %v439
    %515 = vmatpush1.msra.mxu0 %v438
    %516 = vmatprep.subr.mxu0 %v441
    %517 = vmatpush1.msra.mxu0 %v440
    %518 = vmatprep.subr.mxu0 %v443
    %519 = vmatpush1.msra.mxu0 %v442
    %520 = vmatprep.subr.mxu0 %v445
    %521 = vmatpush1.msra.mxu0 %v444
    %522 = vmatprep.subr.mxu0 %v447
    %523 = vmatpush1.msra.mxu0 %v446
    %524 = vmatprep.subr.mxu0 %v449
    %525 = vmatpush1.msra.mxu0 %v448
    %526 = vmatprep.subr.mxu0 %v451
    %527 = vmatpush1.msra.mxu0 %v450
    %528 = vmatprep.subr.mxu0 %v453
    %529 = vmatpush1.msra.mxu0 %v452
    %530 = vmatprep.subr.mxu0 %v455
    %531 = vmatpush1.msra.mxu0 %v454
    %532 = vmatprep.subr.mxu0 %v457
    %533 = vmatpush1.msra.mxu0 %v456
    %534 = vmatprep.subr.mxu0 %v459
    %535 = vmatpush1.msra.mxu0 %v458
    %536 = vmatprep.subr.mxu0 %v461
    %537 = vmatpush1.msra.mxu0 %v460
    %538 = vmatprep.subr.mxu0 %v463
    %539 = vmatpush1.msra.mxu0 %v462
    %540 = vmatprep.subr.mxu0 %v465
    %541 = vmatpush1.msra.mxu0 %v464
    %542 = vmatprep.subr.mxu0 %v467
    %543 = vmatpush1.msra.mxu0 %v466
    %544 = vmatprep.subr.mxu0 %v469
    %545 = vmatpush1.msra.mxu0 %v468
    %546 = vmatprep.subr.mxu0 %v471
    %547 = vmatpush1.msra.mxu0 %v470
    %548 = vmatprep.subr.mxu0 %v473
    %549 = vmatpush1.msra.mxu0 %v472
    %550 = vmatprep.subr.mxu0 %v475
    %551 = vmatpush1.msra.mxu0 %v474
    %552 = vmatprep.subr.mxu0 %v477
    %553 = vmatpush1.msra.mxu0 %v476
    %554 = vmatprep.subr.mxu0 %v479
    %555 = vmatpush1.msra.mxu0 %v478
    %556 = vmatprep.subr.mxu0 %v481
    %557 = vmatpush1.msra.mxu0 %v480
    %558 = vmatprep.subr.mxu0 %v483
    %559 = vmatpush1.msra.mxu0 %v482
    %560 = vmatprep.subr.mxu0 %v485
    %561 = vmatpush1.msra.mxu0 %v484
    %562 = vmatprep.subr.mxu0 %v487
    %563 = vmatpush1.msra.mxu0 %v486
    %564 = vmatprep.subr.mxu0 %v489
    %565 = vmatpush1.msra.mxu0 %v488
    %566 = vmatprep.mubr.f32.mxu0 %v423
    %567 = vmatmul.mubr.f32.gmra.mrb[0].mxu0 %v422
    %v568 = vpop.f32.mrb[0].mxu0
    %v569 = vadd.f32 %v495, %v568
    %v570 = vpop.f32.mrb[0].mxu0
    %v571 = vadd.f32 %v499, %v570
    %572 = vdwg.mxu0
    %v573 = vmax.f32 %v569, 0.0
    %v574 = vmax.f32 %v571, 0.0
    %575 = vst [vmem:[#allocation11 + $0x20] sm:$0xff] %v573
    %576 = vst [vmem:[#allocation11 + $0x28] sm:$0xff] %v574
    %v577 = vld [vmem:[%s7] sm:$0xff]
    %v578 = vld [vmem:[%s7 + $0x8] sm:$0xff]
    %v579 = vld [vmem:[%s7 + $0x10] sm:$0xff]
    %v580 = vld [vmem:[%s7 + $0x18] sm:$0xff]
    %v581 = vld [vmem:[%s7 + $0x20] sm:$0xff]
    %v582 = vld [vmem:[%s7 + $0x28] sm:$0xff]
    %v583 = vld [vmem:[%s7 + $0x30] sm:$0xff]
    %v584 = vld [vmem:[%s7 + $0x38] sm:$0xff]
    %v585 = vld [vmem:[%s7 + $0x40] sm:$0xff]
    %v586 = vld [vmem:[%s7 + $0x48] sm:$0xff]
    %v587 = vld [vmem:[%s7 + $0x50] sm:$0xff]
    %v588 = vld [vmem:[%s7 + $0x58] sm:$0xff]
    %v589 = vld [vmem:[%s7 + $0x60] sm:$0xff]
    %v590 = vld [vmem:[%s7 + $0x68] sm:$0xff]
    %v591 = vld [vmem:[%s7 + $0x70] sm:$0xff]
    %v592 = vld [vmem:[%s7 + $0x78] sm:$0xff]
    %v593 = vld [vmem:[%s7 + $0x80] sm:$0xff]
    %v594 = vld [vmem:[%s7 + $0x88] sm:$0xff]
    %v595 = vld [vmem:[%s7 + $0x90] sm:$0xff]
    %v596 = vld [vmem:[%s7 + $0x98] sm:$0xff]
    %v597 = vld [vmem:[%s7 + $0xa0] sm:$0xff]
    %v598 = vld [vmem:[%s7 + $0xa8] sm:$0xff]
    %v599 = vld [vmem:[%s7 + $0xb0] sm:$0xff]
    %v600 = vld [vmem:[%s7 + $0xb8] sm:$0xff]
    %v601 = vld [vmem:[%s7 + $0xc0] sm:$0xff]
    %v602 = vld [vmem:[%s7 + $0xc8] sm:$0xff]
    %v603 = vld [vmem:[%s7 + $0xd0] sm:$0xff]
    %v604 = vld [vmem:[%s7 + $0xd8] sm:$0xff]
    %v605 = vld [vmem:[%s7 + $0xe0] sm:$0xff]
    %v606 = vld [vmem:[%s7 + $0xe8] sm:$0xff]
    %v607 = vld [vmem:[%s7 + $0xf0] sm:$0xff]
    %v608 = vld [vmem:[%s7 + $0xf8] sm:$0xff]
    %v609 = vld [vmem:[%s7 + $0x100] sm:$0xff]
    %v610 = vld [vmem:[%s7 + $0x108] sm:$0xff]
    %v611 = vld [vmem:[%s7 + $0x110] sm:$0xff]
    %v612 = vld [vmem:[%s7 + $0x118] sm:$0xff]
    %v613 = vld [vmem:[%s7 + $0x120] sm:$0xff]
    %v614 = vld [vmem:[%s7 + $0x128] sm:$0xff]
    %v615 = vld [vmem:[%s7 + $0x130] sm:$0xff]
    %v616 = vld [vmem:[%s7 + $0x138] sm:$0xff]
    %v617 = vld [vmem:[%s7 + $0x140] sm:$0xff]
    %v618 = vld [vmem:[%s7 + $0x148] sm:$0xff]
    %v619 = vld [vmem:[%s7 + $0x150] sm:$0xff]
    %v620 = vld [vmem:[%s7 + $0x158] sm:$0xff]
    %v621 = vld [vmem:[%s7 + $0x160] sm:$0xff]
    %v622 = vld [vmem:[%s7 + $0x168] sm:$0xff]
    %v623 = vld [vmem:[%s7 + $0x170] sm:$0xff]
    %v624 = vld [vmem:[%s7 + $0x178] sm:$0xff]
    %v625 = vld [vmem:[%s7 + $0x180] sm:$0xff]
    %v626 = vld [vmem:[%s7 + $0x188] sm:$0xff]
    %v627 = vld [vmem:[%s7 + $0x190] sm:$0xff]
    %v628 = vld [vmem:[%s7 + $0x198] sm:$0xff]
    %v629 = vld [vmem:[%s7 + $0x1a0] sm:$0xff]
    %v630 = vld [vmem:[%s7 + $0x1a8] sm:$0xff]
    %v631 = vld [vmem:[%s7 + $0x1b0] sm:$0xff]
    %v632 = vld [vmem:[%s7 + $0x1b8] sm:$0xff]
    %v633 = vld [vmem:[%s7 + $0x1c0] sm:$0xff]
    %v634 = vld [vmem:[%s7 + $0x1c8] sm:$0xff]
    %v635 = vld [vmem:[%s7 + $0x1d0] sm:$0xff]
    %v636 = vld [vmem:[%s7 + $0x1d8] sm:$0xff]
    %v637 = vld [vmem:[%s7 + $0x1e0] sm:$0xff]
    %v638 = vld [vmem:[%s7 + $0x1e8] sm:$0xff]
    %v639 = vld [vmem:[%s7 + $0x1f0] sm:$0xff]
    %v640 = vld [vmem:[%s7 + $0x1f8] sm:$0xff]
    %641 = vmatprep.subr.mxu0 0.0
    %642 = vmatpush1.msra.mxu0 %v609
    %643 = vmatprep.subr.mxu0 0.0
    %644 = vmatpush1.msra.mxu0 %v610
    %645 = vmatprep.subr.mxu0 0.0
    %646 = vmatpush1.msra.mxu0 %v611
    %647 = vmatprep.subr.mxu0 0.0
    %648 = vmatpush1.msra.mxu0 %v612
    %649 = vmatprep.subr.mxu0 0.0
    %650 = vmatpush1.msra.mxu0 %v613
    %651 = vmatprep.subr.mxu0 0.0
    %652 = vmatpush1.msra.mxu0 %v614
    %653 = vmatprep.subr.mxu0 0.0
    %654 = vmatpush1.msra.mxu0 %v615
    %655 = vmatprep.subr.mxu0 0.0
    %656 = vmatpush1.msra.mxu0 %v616
    %657 = vmatprep.subr.mxu0 0.0
    %658 = vmatpush1.msra.mxu0 %v617
    %659 = vmatprep.subr.mxu0 0.0
    %660 = vmatpush1.msra.mxu0 %v618
    %661 = vmatprep.subr.mxu0 0.0
    %662 = vmatpush1.msra.mxu0 %v619
    %663 = vmatprep.subr.mxu0 0.0
    %664 = vmatpush1.msra.mxu0 %v620
    %665 = vmatprep.subr.mxu0 0.0
    %666 = vmatpush1.msra.mxu0 %v621
    %667 = vmatprep.subr.mxu0 0.0
    %668 = vmatpush1.msra.mxu0 %v622
    %669 = vmatprep.subr.mxu0 0.0
    %670 = vmatpush1.msra.mxu0 %v623
    %671 = vmatprep.subr.mxu0 0.0
    %672 = vmatpush1.msra.mxu0 %v624
    %673 = vmatprep.subr.mxu0 0.0
    %674 = vmatpush1.msra.mxu0 %v625
    %675 = vmatprep.subr.mxu0 0.0
    %676 = vmatpush1.msra.mxu0 %v626
    %677 = vmatprep.subr.mxu0 0.0
    %678 = vmatpush1.msra.mxu0 %v627
    %679 = vmatprep.subr.mxu0 0.0
    %680 = vmatpush1.msra.mxu0 %v628
    %681 = vmatprep.subr.mxu0 0.0
    %682 = vmatpush1.msra.mxu0 %v629
    %683 = vmatprep.subr.mxu0 0.0
    %684 = vmatpush1.msra.mxu0 %v630
    %685 = vmatprep.subr.mxu0 0.0
    %686 = vmatpush1.msra.mxu0 %v631
    %687 = vmatprep.subr.mxu0 0.0
    %688 = vmatpush1.msra.mxu0 %v632
    %689 = vmatprep.subr.mxu0 0.0
    %690 = vmatpush1.msra.mxu0 %v633
    %691 = vmatprep.subr.mxu0 0.0
    %692 = vmatpush1.msra.mxu0 %v634
    %693 = vmatprep.subr.mxu0 0.0
    %694 = vmatpush1.msra.mxu0 %v635
    %695 = vmatprep.subr.mxu0 0.0
    %696 = vmatpush1.msra.mxu0 %v636
    %697 = vmatprep.subr.mxu0 0.0
    %698 = vmatpush1.msra.mxu0 %v637
    %699 = vmatprep.subr.mxu0 0.0
    %700 = vmatpush1.msra.mxu0 %v638
    %701 = vmatprep.subr.mxu0 0.0
    %702 = vmatpush1.msra.mxu0 %v639
    %703 = vmatprep.subr.mxu0 0.0
    %704 = vmatpush1.msra.mxu0 %v640
    %705 = vmatprep.mubr.f32.mxu0 %v405
    %706 = vmatmul.mubr.f32.gmra.mrb[0].mxu0 %v404
    %v707 = vpop.f32.mrb[0].mxu0
    %v708 = vadd.f32 0.0, %v707
    %v709 = vpop.f32.mrb[0].mxu0
    %710 = vdwg.mxu0
    %711 = vmatprep.subr.mxu0 0.0
    %712 = vmatpush1.msra.mxu0 %v577
    %713 = vmatprep.subr.mxu0 0.0
    %714 = vmatpush1.msra.mxu0 %v578
    %715 = vmatprep.subr.mxu0 0.0
    %716 = vmatpush1.msra.mxu0 %v579
    %717 = vmatprep.subr.mxu0 0.0
    %718 = vmatpush1.msra.mxu0 %v580
    %719 = vmatprep.subr.mxu0 0.0
    %720 = vmatpush1.msra.mxu0 %v581
    %721 = vmatprep.subr.mxu0 0.0
    %722 = vmatpush1.msra.mxu0 %v582
    %723 = vmatprep.subr.mxu0 0.0
    %724 = vmatpush1.msra.mxu0 %v583
    %725 = vmatprep.subr.mxu0 0.0
    %726 = vmatpush1.msra.mxu0 %v584
    %727 = vmatprep.subr.mxu0 0.0
    %728 = vmatpush1.msra.mxu0 %v585
    %729 = vmatprep.subr.mxu0 0.0
    %730 = vmatpush1.msra.mxu0 %v586
    %731 = vmatprep.subr.mxu0 0.0
    %732 = vmatpush1.msra.mxu0 %v587
    %733 = vmatprep.subr.mxu0 0.0
    %734 = vmatpush1.msra.mxu0 %v588
    %735 = vmatprep.subr.mxu0 0.0
    %736 = vmatpush1.msra.mxu0 %v589
    %737 = vmatprep.subr.mxu0 0.0
    %738 = vmatpush1.msra.mxu0 %v590
    %739 = vmatprep.subr.mxu0 0.0
    %740 = vmatpush1.msra.mxu0 %v591
    %741 = vmatprep.subr.mxu0 0.0
    %742 = vmatpush1.msra.mxu0 %v592
    %743 = vmatprep.subr.mxu0 0.0
    %744 = vmatpush1.msra.mxu0 %v593
    %745 = vmatprep.subr.mxu0 0.0
    %746 = vmatpush1.msra.mxu0 %v594
    %747 = vmatprep.subr.mxu0 0.0
    %748 = vmatpush1.msra.mxu0 %v595
    %749 = vmatprep.subr.mxu0 0.0
    %750 = vmatpush1.msra.mxu0 %v596
    %751 = vmatprep.subr.mxu0 0.0
    %752 = vmatpush1.msra.mxu0 %v597
    %753 = vmatprep.subr.mxu0 0.0
    %754 = vmatpush1.msra.mxu0 %v598
    %755 = vmatprep.subr.mxu0 0.0
    %756 = vmatpush1.msra.mxu0 %v599
    %757 = vmatprep.subr.mxu0 0.0
    %758 = vmatpush1.msra.mxu0 %v600
    %759 = vmatprep.subr.mxu0 0.0
    %760 = vmatpush1.msra.mxu0 %v601
    %761 = vmatprep.subr.mxu0 0.0
    %762 = vmatpush1.msra.mxu0 %v602
    %763 = vmatprep.subr.mxu0 0.0
    %764 = vmatpush1.msra.mxu0 %v603
    %765 = vmatprep.subr.mxu0 0.0
    %766 = vmatpush1.msra.mxu0 %v604
    %767 = vmatprep.subr.mxu0 0.0
    %768 = vmatpush1.msra.mxu0 %v605
    %769 = vmatprep.subr.mxu0 0.0
    %770 = vmatpush1.msra.mxu0 %v606
    %771 = vmatprep.subr.mxu0 0.0
    %772 = vmatpush1.msra.mxu0 %v607
    %773 = vmatprep.subr.mxu0 0.0
    %774 = vmatpush1.msra.mxu0 %v608
    %775 = vmatprep.mubr.f32.mxu0 %v236
    %776 = vmatmul.mubr.f32.gmra.mrb[0].mxu0 %v235
    %v777 = vpop.f32.mrb[0].mxu0
    %v778 = vadd.f32 %v708, %v777
    %v779 = vpop.f32.mrb[0].mxu0
    %780 = vdwg.mxu0
    %v781 = vld [vmem:[%s7 + $0x200] sm:$0xff]
    %v782 = vld [vmem:[%s7 + $0x208] sm:$0xff]
    %v783 = vld [vmem:[%s7 + $0x210] sm:$0xff]
    %v784 = vld [vmem:[%s7 + $0x218] sm:$0xff]
    %v785 = vld [vmem:[%s7 + $0x220] sm:$0xff]
    %v786 = vld [vmem:[%s7 + $0x228] sm:$0xff]
    %v787 = vld [vmem:[%s7 + $0x230] sm:$0xff]
    %v788 = vld [vmem:[%s7 + $0x238] sm:$0xff]
    %v789 = vld [vmem:[%s7 + $0x240] sm:$0xff]
    %v790 = vld [vmem:[%s7 + $0x248] sm:$0xff]
    %v791 = vld [vmem:[%s7 + $0x250] sm:$0xff]
    %v792 = vld [vmem:[%s7 + $0x258] sm:$0xff]
    %v793 = vld [vmem:[%s7 + $0x260] sm:$0xff]
    %v794 = vld [vmem:[%s7 + $0x268] sm:$0xff]
    %v795 = vld [vmem:[%s7 + $0x270] sm:$0xff]
    %v796 = vld [vmem:[%s7 + $0x278] sm:$0xff]
    %v797 = vld [vmem:[%s7 + $0x280] sm:$0xff]
    %v798 = vld [vmem:[%s7 + $0x288] sm:$0xff]
    %v799 = vld [vmem:[%s7 + $0x290] sm:$0xff]
    %v800 = vld [vmem:[%s7 + $0x298] sm:$0xff]
    %v801 = vld [vmem:[%s7 + $0x2a0] sm:$0xff]
    %v802 = vld [vmem:[%s7 + $0x2a8] sm:$0xff]
    %v803 = vld [vmem:[%s7 + $0x2b0] sm:$0xff]
    %v804 = vld [vmem:[%s7 + $0x2b8] sm:$0xff]
    %v805 = vld [vmem:[%s7 + $0x2c0] sm:$0xff]
    %v806 = vld [vmem:[%s7 + $0x2c8] sm:$0xff]
    %v807 = vld [vmem:[%s7 + $0x2d0] sm:$0xff]
    %v808 = vld [vmem:[%s7 + $0x2d8] sm:$0xff]
    %v809 = vld [vmem:[%s7 + $0x2e0] sm:$0xff]
    %v810 = vld [vmem:[%s7 + $0x2e8] sm:$0xff]
    %v811 = vld [vmem:[%s7 + $0x2f0] sm:$0xff]
    %v812 = vld [vmem:[%s7 + $0x2f8] sm:$0xff]
    %813 = vmatprep.subr.mxu0 0.0
    %814 = vmatpush1.msra.mxu0 %v781
    %815 = vmatprep.subr.mxu0 0.0
    %816 = vmatpush1.msra.mxu0 %v782
    %817 = vmatprep.subr.mxu0 0.0
    %818 = vmatpush1.msra.mxu0 %v783
    %819 = vmatprep.subr.mxu0 0.0
    %820 = vmatpush1.msra.mxu0 %v784
    %821 = vmatprep.subr.mxu0 0.0
    %822 = vmatpush1.msra.mxu0 %v785
    %823 = vmatprep.subr.mxu0 0.0
    %824 = vmatpush1.msra.mxu0 %v786
    %825 = vmatprep.subr.mxu0 0.0
    %826 = vmatpush1.msra.mxu0 %v787
    %827 = vmatprep.subr.mxu0 0.0
    %828 = vmatpush1.msra.mxu0 %v788
    %829 = vmatprep.subr.mxu0 0.0
    %830 = vmatpush1.msra.mxu0 %v789
    %831 = vmatprep.subr.mxu0 0.0
    %832 = vmatpush1.msra.mxu0 %v790
    %833 = vmatprep.subr.mxu0 0.0
    %834 = vmatpush1.msra.mxu0 %v791
    %835 = vmatprep.subr.mxu0 0.0
    %836 = vmatpush1.msra.mxu0 %v792
    %837 = vmatprep.subr.mxu0 0.0
    %838 = vmatpush1.msra.mxu0 %v793
    %839 = vmatprep.subr.mxu0 0.0
    %840 = vmatpush1.msra.mxu0 %v794
    %841 = vmatprep.subr.mxu0 0.0
    %842 = vmatpush1.msra.mxu0 %v795
    %843 = vmatprep.subr.mxu0 0.0
    %844 = vmatpush1.msra.mxu0 %v796
    %845 = vmatprep.subr.mxu0 0.0
    %846 = vmatpush1.msra.mxu0 %v797
    %847 = vmatprep.subr.mxu0 0.0
    %848 = vmatpush1.msra.mxu0 %v798
    %849 = vmatprep.subr.mxu0 0.0
    %850 = vmatpush1.msra.mxu0 %v799
    %851 = vmatprep.subr.mxu0 0.0
    %852 = vmatpush1.msra.mxu0 %v800
    %853 = vmatprep.subr.mxu0 0.0
    %854 = vmatpush1.msra.mxu0 %v801
    %855 = vmatprep.subr.mxu0 0.0
    %856 = vmatpush1.msra.mxu0 %v802
    %857 = vmatprep.subr.mxu0 0.0
    %858 = vmatpush1.msra.mxu0 %v803
    %859 = vmatprep.subr.mxu0 0.0
    %860 = vmatpush1.msra.mxu0 %v804
    %861 = vmatprep.subr.mxu0 0.0
    %862 = vmatpush1.msra.mxu0 %v805
    %863 = vmatprep.subr.mxu0 0.0
    %864 = vmatpush1.msra.mxu0 %v806
    %865 = vmatprep.subr.mxu0 0.0
    %866 = vmatpush1.msra.mxu0 %v807
    %867 = vmatprep.subr.mxu0 0.0
    %868 = vmatpush1.msra.mxu0 %v808
    %869 = vmatprep.subr.mxu0 0.0
    %870 = vmatpush1.msra.mxu0 %v809
    %871 = vmatprep.subr.mxu0 0.0
    %872 = vmatpush1.msra.mxu0 %v810
    %873 = vmatprep.subr.mxu0 0.0
    %874 = vmatpush1.msra.mxu0 %v811
    %875 = vmatprep.subr.mxu0 0.0
    %876 = vmatpush1.msra.mxu0 %v812
    %877 = vmatprep.mubr.f32.mxu0 %v574
    %878 = vmatmul.mubr.f32.gmra.mrb[0].mxu0 %v573
    %v879 = vpop.f32.mrb[0].mxu0
    %v880 = vadd.f32 0.0, %v879
    %v881 = vpop.f32.mrb[0].mxu0
    %882 = vdwg.mxu0
    %v883 = vadd.f32 %v778, %v880
    %v884 = vld [vmem:[%s8] sm:$0x1]
    %v886 = vlaneseq
    %v887 = vshrl.u32 %v886, 7
    %v888 = vsub.s32 0, %v887
    %v889 = vrot.slane %v884, %v888
    %v891 = vadd.f32 %v883, %v889
    %vm892 = vcmask 261120
    %v893 = vsel %vm892, %v891, -inf
    %894 = vmax.xlane.f32.xlu0 %v893
    %v895 = vpop.xlane.xlu0 %894
    %v896 = vsub.f32 %v891, %v895
    %v897 = vmul.f32 %v896, 1.442695
    %v898 = vpow.pop %v897
    %v899 = vsel %vm892, %v898, 0.0
    %900 = vadd.xlane.f32.xlu0 %v899
    %v901 = vpop.xlane.xlu0 %900
    %v902 = vlog2.pop %v901
    %v903 = vmul.f32 %v902, 0.6931472
    %v904 = vsub.f32 %v896, %v903
    %905 = vst.msk [vmem:[#allocation13] sm:$0xff] %vm892, %v904
    // Predicated region
    $region46: #{tpu_custom_call.1} parent=1 // pred_check
      _
    $region47: #{tpu_custom_call.1} parent=1 // pred_check_branch
      %907 = sbr.rel (0) target = $region49
    $region48: #{tpu_custom_call.1} parent=1 // pred_region
      %s909 = ssub.s32 256, 256
      %910 = vsyncadd [#allocation4], %s909
      %s912 = sshll.u32 [#allocation7], 4
      %s913 = int_to_ptr.vmem [resolvable:$true] %s912
      %915 = dma.vmem_to_hbm [thread:$0]  %s913, 256, %s9, [#allocation4]
    $region49: #{tpu_custom_call.1} parent=1 // pred_fallthru
      _
    // Predicated region
    $region50: #{tpu_custom_call.1} parent=1 // pred_check
      _
    $region51: #{tpu_custom_call.1} parent=1 // pred_check_branch
      %917 = sbr.rel (0) target = $region53
    $region52: #{tpu_custom_call.1} parent=1 // pred_region
      %s919 = ssub.s32 256, 256
      %920 = vsyncadd [#allocation9], %s919
      %s922 = sshll.u32 [#allocation8], 4
      %s923 = int_to_ptr.vmem [resolvable:$true] %s922
      %925 = dma.vmem_to_hbm [thread:$0]  %s923, 256, %s10, [#allocation9]
    $region53: #{tpu_custom_call.1} parent=1 // pred_fallthru
      _
    // Predicated region
    $region54: #{tpu_custom_call.1} parent=1 // pred_check
      _
    $region55: #{tpu_custom_call.1} parent=1 // pred_check_branch
      %927 = sbr.rel (0) target = $region57
    $region56: #{tpu_custom_call.1} parent=1 // pred_region
      %s929 = ssub.s32 256, 256
      %930 = vsyncadd [#allocation9], %s929
      %s932 = sshll.u32 [#allocation10], 4
      %s933 = int_to_ptr.vmem [resolvable:$true] %s932
      %935 = dma.vmem_to_hbm [thread:$0]  %s933, 256, %s11, [#allocation9]
    $region57: #{tpu_custom_call.1} parent=1 // pred_fallthru
      _
    // Predicated region
    $region58: #{tpu_custom_call.1} parent=1 // pred_check
      _
    $region59: #{tpu_custom_call.1} parent=1 // pred_check_branch
      %937 = sbr.rel (0) target = $region61
    $region60: #{tpu_custom_call.1} parent=1 // pred_region
      %s939 = ssub.s32 768, 768
      %940 = vsyncadd [#allocation12], %s939
      %s942 = sshll.u32 [#allocation11], 4
      %s943 = int_to_ptr.vmem [resolvable:$true] %s942
      %945 = dma.vmem_to_hbm [thread:$0]  %s943, 768, %s12, [#allocation12]
    $region61: #{tpu_custom_call.1} parent=1 // pred_fallthru
      _
    // Predicated region
    $region62: #{tpu_custom_call.1} parent=1 // pred_check
      _
    $region63: #{tpu_custom_call.1} parent=1 // pred_check_branch
      %947 = sbr.rel (0) target = $region65
    $region64: #{tpu_custom_call.1} parent=1 // pred_region
      %s949 = ssub.s32 128, 128
      %950 = vsyncadd [#allocation12], %s949
      %s952 = sshll.u32 [#allocation13], 4
      %s953 = int_to_ptr.vmem [resolvable:$true] %s952
      %955 = dma.vmem_to_hbm [thread:$0]  %s953, 128, %s13, [#allocation12]
    $region65: #{tpu_custom_call.1} parent=1 // pred_fallthru
      _
    // Predicated region
    $region66: #{tpu_custom_call.1} parent=1 // pred_check
      _
    $region67: #{tpu_custom_call.1} parent=1 // pred_check_branch
      %957 = sbr.rel (0) target = $region69
    $region68: #{tpu_custom_call.1} parent=1 // pred_region
      %958 = dma.done [#allocation4], 256
    $region69: #{tpu_custom_call.1} parent=1 // pred_fallthru
      _
    // Predicated region
    $region70: #{tpu_custom_call.1} parent=1 // pred_check
      _
    $region71: #{tpu_custom_call.1} parent=1 // pred_check_branch
      %960 = sbr.rel (0) target = $region73
    $region72: #{tpu_custom_call.1} parent=1 // pred_region
      %961 = dma.done [#allocation9], 256
    $region73: #{tpu_custom_call.1} parent=1 // pred_fallthru
      _
    // Predicated region
    $region74: #{tpu_custom_call.1} parent=1 // pred_check
      _
    $region75: #{tpu_custom_call.1} parent=1 // pred_check_branch
      %963 = sbr.rel (0) target = $region77
    $region76: #{tpu_custom_call.1} parent=1 // pred_region
      %964 = dma.done [#allocation9], 256
    $region77: #{tpu_custom_call.1} parent=1 // pred_fallthru
      _
    // Predicated region
    $region78: #{tpu_custom_call.1} parent=1 // pred_check
      _
    $region79: #{tpu_custom_call.1} parent=1 // pred_check_branch
      %966 = sbr.rel (0) target = $region81
    $region80: #{tpu_custom_call.1} parent=1 // pred_region
      %967 = dma.done [#allocation12], 768
    $region81: #{tpu_custom_call.1} parent=1 // pred_fallthru
      _
    // Predicated region
    $region82: #{tpu_custom_call.1} parent=1 // pred_check
      _
    $region83: #{tpu_custom_call.1} parent=1 // pred_check_branch
      %969 = sbr.rel (0) target = $region85
    $region84: #{tpu_custom_call.1} parent=1 // pred_region
      %970 = dma.done [#allocation12], 128
    $region85: #{tpu_custom_call.1} parent=1 // pred_fallthru
      _
    %971 = vsyncpa [#allocation3], 1
    %972 = vsyncpa [#allocation6], 1
    %973 = vsyncpa [#allocation4], 1
    %974 = vsyncpa [#allocation9], 1
    %975 = vsyncpa [#allocation12], 1

</llo_original>
